<compile_context>
chip_gen: v6e
topology: v6e:2x2x1
jax: 0.10.0
libtpu: 0.0.40
codegen_flags: <defaults>
</compile_context>

<pallas_src>
import jax
import jax.numpy as jnp
from jax import lax
from jax.experimental import pallas as pl
from jax.experimental.pallas import tpu as pltpu


_CHUNK_ROWS = 16  # sublane rows per inner step (16 x 128 lanes = 2 vregs/chan)


def _process_rows(x_ref, ev_ref, w, b, r0, nrows, out_dtype):
    """Evidence for `nrows` sublane rows starting at row offset `r0`."""
    cin = x_ref.shape[0]
    classes = ev_ref.shape[0]
    # Load the x chunk once (cin * nrows/8 vregs) and reuse it across classes.
    xs = [x_ref[k, pl.ds(r0, nrows), :].astype(jnp.float32) for k in range(cin)]
    for c in range(classes):
        acc = xs[0] * w[0][c] + b[c]
        for k in range(1, cin):
            acc = acc + xs[k] * w[k][c]
        # Numerically stable softplus: max(z,0) + log1p(exp(-|z|)).
        # (2 EUP ops/elem; fully hidden under HBM for f32 I/O on all chips.
        #  TODO(synk): with bf16 I/O on v7x the EUP becomes a co-bottleneck;
        #  a bf16 exp/log1p path would keep it HBM-bound there.)
        ev = jnp.maximum(acc, 0.0) + jnp.log1p(jnp.exp(-jnp.abs(acc)))
        ev_ref[c, pl.ds(r0, nrows), :] = ev.astype(out_dtype)


def _tss_kernel(x_ref, w_ref, b_ref, ev_ref):
    """One (batch, row-block) step.

    x_ref : (Cin, TR, 128)      VMEM  lane-dense pixel features
    w_ref : (Cin*classes,)      SMEM  flattened 1x1-conv weight (stand-in head)
    b_ref : (classes,)          SMEM  bias
    ev_ref: (classes, TR, 128)  VMEM  evidence = softplus(w^T x + b)
    """
    cin, tr, _ = x_ref.shape
    classes = ev_ref.shape[0]
    out_dtype = ev_ref.dtype

    # Hoist all SMEM scalar reads out of the row loop (scalar slot, free).
    w = [[w_ref[k * classes + c] for c in range(classes)] for k in range(cin)]
    b = [b_ref[c] for c in range(classes)]

    chunk = _CHUNK_ROWS if tr >= _CHUNK_ROWS else tr
    n_full = tr // chunk
    rem = tr - n_full * chunk

    if n_full == 1:
        # Small tile: single static chunk, no loop machinery.
        _process_rows(x_ref, ev_ref, w, b, 0, chunk, out_dtype)
    else:
        def body(ci, carry):
            r0 = pl.multiple_of(ci * chunk, chunk)   # tile-aligned sublane base
            _process_rows(x_ref, ev_ref, w, b, r0, chunk, out_dtype)
            return carry
        lax.fori_loop(0, n_full, body, 0)
    if rem:
        _process_rows(x_ref, ev_ref, w, b, n_full * chunk, rem, out_dtype)


def tss_forward(x_nchw, w, b, *, tile_rows=512):
    """Eval-mode TSS forward: evidence, shape (B, classes, H, W).

    tile_rows = sublane rows (of 128 lanes) per grid step. 512 rows == 64K
    pixels -> ~2 MiB f32 payload per step (x2 double-buffered ~= 4 MiB VMEM),
    well under the scoped VMEM limit on v5e/v6e/v7x and far above the ~0.35us
    per-step pipeline overhead.
    """
    B, Cin, H, W = x_nchw.shape
    classes = w.shape[1]
    L = H * W

    # Lane-dense layout: spatial axis split into (rows, 128). When L % 128 == 0
    # (the common case, incl. this test) the reshape is free (no data movement).
    l128 = ((L + 127) // 128) * 128
    R = l128 // 128
    if l128 != L:
        # TODO(synk): an in-kernel lane mask on the last step would avoid this
        # pad/slice HBM round trip for ragged L; unnecessary when 128 | L.
        x4 = jnp.pad(x_nchw.reshape(B, Cin, L),
                     ((0, 0), (0, 0), (0, l128 - L))).reshape(B, Cin, R, 128)
    else:
        x4 = x_nchw.reshape(B, Cin, R, 128)

    # Row tiling: block rows must be a multiple of 8 or equal the full extent.
    tile_r = min(tile_rows, R)
    if tile_r < R:
        tile_r = max(8, (tile_r // 8) * 8)
    n_row_blocks = pl.cdiv(R, tile_r)
    if B * n_row_blocks < 2 and R > 8:
        # Keep >= 2 parallel grid steps so both v7x TensorCores get work.
        tile_r = max(8, -(-((R + 1) // 2) // 8) * 8)
        n_row_blocks = pl.cdiv(R, tile_r)

    grid = (B, n_row_blocks)

    ev4 = pl.pallas_call(
        _tss_kernel,
        out_shape=jax.ShapeDtypeStruct((B, classes, R, 128), x_nchw.dtype),
        grid_spec=pltpu.PrefetchScalarGridSpec(
            num_scalar_prefetch=0,
            grid=grid,
            in_specs=[
                # pixel slab: batch squeezed, channels full, rows tiled, lanes full
                pl.BlockSpec((None, Cin, tile_r, 128),
                             lambda bi, ri: (bi, 0, ri, 0)),
                # tiny weight / bias live in SMEM, read as scalars (1D: no 2D pad)
                pl.BlockSpec(memory_space=pltpu.MemorySpace.SMEM),
                pl.BlockSpec(memory_space=pltpu.MemorySpace.SMEM),
            ],
            out_specs=pl.BlockSpec((None, classes, tile_r, 128),
                                   lambda bi, ri: (bi, 0, ri, 0)),
        ),
        compiler_params=pltpu.CompilerParams(
            dimension_semantics=("parallel", "parallel")),
    )(x4, w.astype(jnp.float32).reshape(-1), b.astype(jnp.float32))

    ev = ev4.reshape(B, classes, l128)
    if l128 != L:
        ev = ev[:, :, :L]
    return ev.reshape(B, classes, H, W)


def tss_reference(x_nchw, w, b):
    """Pure-JAX reference of the same computation (no layout changes)."""
    logits = jnp.einsum("bchw,cd->bdhw", x_nchw, w) + b[None, :, None, None]
    return jax.nn.softplus(logits)


if __name__ == "__main__":
    # Small shapes consistent with TSS(classes=4, modal='four'): 4 input
    # modalities, 4 output classes, batch=2, 16x16 spatial.
    B, Cin, H, W = 2, 4, 16, 16
    classes = 4

    key = jax.random.PRNGKey(0)
    kx, kw, kb = jax.random.split(key, 3)
    x = jax.random.normal(kx, (B, Cin, H, W), dtype=jnp.float32)
    # Deterministic parameter init for the 1x1-conv stand-in backbone head.
    w = jax.random.normal(kw, (Cin, classes), dtype=jnp.float32) * 0.5
    b = jax.random.normal(kb, (classes,), dtype=jnp.float32) * 0.1

    evidence = jax.block_until_ready(tss_forward(x, w, b))
    ref = jax.block_until_ready(tss_reference(x, w, b))

    assert evidence.shape == (B, classes, H, W)
    assert jnp.allclose(evidence, ref, atol=1e-5, rtol=1e-5), "mismatch vs reference"
    # alpha = evidence + 1 would feed dce_eviloss in train mode (loss fn not
    # provided in the module source).
    print("KERNEL_OK")
</pallas_src>

<mosaic_0001>
module attributes {stable_mosaic.version = 11 : i64} {
  func.func @_tss_kernel(%arg0: i32, %arg1: i32, %arg2: memref<1x4x2x128xf32, #tpu.memory_space<vmem>>, %arg3: memref<16xf32, #tpu.memory_space<smem>>, %arg4: memref<4xf32, #tpu.memory_space<smem>>, %arg5: memref<1x4x2x128xf32, #tpu.memory_space<vmem>>) attributes {dimension_semantics = [#tpu.dimension_semantics<parallel>, #tpu.dimension_semantics<parallel>], iteration_bounds = array<i64: 2, 1>, scalar_prefetch = 0 : i64, scratch_operands = 0 : i64, tpu.core_type = #tpu.core_type<tc>, window_params = [{transform_indices = @transform_0, window_bounds = array<i64: 1, 4, 2, 128>}, {transform_indices = @transform_1, window_bounds = array<i64: 16>}, {transform_indices = @transform_2, window_bounds = array<i64: 4>}, {transform_indices = @transform_3, window_bounds = array<i64: 1, 4, 2, 128>}]} {
    %c0 = arith.constant 0 : index
    %0 = memref.load %arg3[%c0] : memref<16xf32, #tpu.memory_space<smem>>
    %c1 = arith.constant 1 : index
    %1 = memref.load %arg3[%c1] : memref<16xf32, #tpu.memory_space<smem>>
    %c2 = arith.constant 2 : index
    %2 = memref.load %arg3[%c2] : memref<16xf32, #tpu.memory_space<smem>>
    %c3 = arith.constant 3 : index
    %3 = memref.load %arg3[%c3] : memref<16xf32, #tpu.memory_space<smem>>
    %c4 = arith.constant 4 : index
    %4 = memref.load %arg3[%c4] : memref<16xf32, #tpu.memory_space<smem>>
    %c5 = arith.constant 5 : index
    %5 = memref.load %arg3[%c5] : memref<16xf32, #tpu.memory_space<smem>>
    %c6 = arith.constant 6 : index
    %6 = memref.load %arg3[%c6] : memref<16xf32, #tpu.memory_space<smem>>
    %c7 = arith.constant 7 : index
    %7 = memref.load %arg3[%c7] : memref<16xf32, #tpu.memory_space<smem>>
    %c8 = arith.constant 8 : index
    %8 = memref.load %arg3[%c8] : memref<16xf32, #tpu.memory_space<smem>>
    %c9 = arith.constant 9 : index
    %9 = memref.load %arg3[%c9] : memref<16xf32, #tpu.memory_space<smem>>
    %c10 = arith.constant 10 : index
    %10 = memref.load %arg3[%c10] : memref<16xf32, #tpu.memory_space<smem>>
    %c11 = arith.constant 11 : index
    %11 = memref.load %arg3[%c11] : memref<16xf32, #tpu.memory_space<smem>>
    %c12 = arith.constant 12 : index
    %12 = memref.load %arg3[%c12] : memref<16xf32, #tpu.memory_space<smem>>
    %c13 = arith.constant 13 : index
    %13 = memref.load %arg3[%c13] : memref<16xf32, #tpu.memory_space<smem>>
    %c14 = arith.constant 14 : index
    %14 = memref.load %arg3[%c14] : memref<16xf32, #tpu.memory_space<smem>>
    %c15 = arith.constant 15 : index
    %15 = memref.load %arg3[%c15] : memref<16xf32, #tpu.memory_space<smem>>
    %c0_0 = arith.constant 0 : index
    %16 = memref.load %arg4[%c0_0] : memref<4xf32, #tpu.memory_space<smem>>
    %c1_1 = arith.constant 1 : index
    %17 = memref.load %arg4[%c1_1] : memref<4xf32, #tpu.memory_space<smem>>
    %c2_2 = arith.constant 2 : index
    %18 = memref.load %arg4[%c2_2] : memref<4xf32, #tpu.memory_space<smem>>
    %c3_3 = arith.constant 3 : index
    %19 = memref.load %arg4[%c3_3] : memref<4xf32, #tpu.memory_space<smem>>
    %c0_4 = arith.constant 0 : index
    %c0_5 = arith.constant 0 : index
    %c0_6 = arith.constant 0 : index
    %c0_7 = arith.constant 0 : index
    %20 = vector.load %arg2[%c0_4, %c0_5, %c0_6, %c0_7] : memref<1x4x2x128xf32, #tpu.memory_space<vmem>>, vector<1x1x2x128xf32>
    %21 = vector.shape_cast %20 : vector<1x1x2x128xf32> to vector<2x128xf32>
    %c0_8 = arith.constant 0 : index
    %c1_9 = arith.constant 1 : index
    %c0_10 = arith.constant 0 : index
    %c0_11 = arith.constant 0 : index
    %22 = vector.load %arg2[%c0_8, %c1_9, %c0_10, %c0_11] : memref<1x4x2x128xf32, #tpu.memory_space<vmem>>, vector<1x1x2x128xf32>
    %23 = vector.shape_cast %22 : vector<1x1x2x128xf32> to vector<2x128xf32>
    %c0_12 = arith.constant 0 : index
    %c2_13 = arith.constant 2 : index
    %c0_14 = arith.constant 0 : index
    %c0_15 = arith.constant 0 : index
    %24 = vector.load %arg2[%c0_12, %c2_13, %c0_14, %c0_15] : memref<1x4x2x128xf32, #tpu.memory_space<vmem>>, vector<1x1x2x128xf32>
    %25 = vector.shape_cast %24 : vector<1x1x2x128xf32> to vector<2x128xf32>
    %c0_16 = arith.constant 0 : index
    %c3_17 = arith.constant 3 : index
    %c0_18 = arith.constant 0 : index
    %c0_19 = arith.constant 0 : index
    %26 = vector.load %arg2[%c0_16, %c3_17, %c0_18, %c0_19] : memref<1x4x2x128xf32, #tpu.memory_space<vmem>>, vector<1x1x2x128xf32>
    %27 = vector.shape_cast %26 : vector<1x1x2x128xf32> to vector<2x128xf32>
    %28 = vector.broadcast %0 : f32 to vector<2x128xf32>
    %29 = arith.mulf %21, %28 : vector<2x128xf32>
    %30 = vector.broadcast %16 : f32 to vector<2x128xf32>
    %31 = arith.addf %29, %30 : vector<2x128xf32>
    %32 = vector.broadcast %4 : f32 to vector<2x128xf32>
    %33 = arith.mulf %23, %32 : vector<2x128xf32>
    %34 = arith.addf %31, %33 : vector<2x128xf32>
    %35 = vector.broadcast %8 : f32 to vector<2x128xf32>
    %36 = arith.mulf %25, %35 : vector<2x128xf32>
    %37 = arith.addf %34, %36 : vector<2x128xf32>
    %38 = vector.broadcast %12 : f32 to vector<2x128xf32>
    %39 = arith.mulf %27, %38 : vector<2x128xf32>
    %40 = arith.addf %37, %39 : vector<2x128xf32>
    %cst = arith.constant 0.000000e+00 : f32
    %41 = vector.broadcast %cst : f32 to vector<2x128xf32>
    %42 = arith.maximumf %40, %41 : vector<2x128xf32>
    %43 = math.absf %40 : vector<2x128xf32>
    %cst_20 = arith.constant 0.000000e+00 : f32
    %44 = vector.broadcast %cst_20 : f32 to vector<2x128xf32>
    %45 = arith.subf %44, %43 : vector<2x128xf32>
    %46 = math.exp %45 : vector<2x128xf32>
    %47 = math.log1p %46 : vector<2x128xf32>
    %48 = arith.addf %42, %47 : vector<2x128xf32>
    %c0_21 = arith.constant 0 : index
    %c0_22 = arith.constant 0 : index
    %c0_23 = arith.constant 0 : index
    %c0_24 = arith.constant 0 : index
    %49 = vector.load %arg5[%c0_21, %c0_22, %c0_23, %c0_24] : memref<1x4x2x128xf32, #tpu.memory_space<vmem>>, vector<1x1x2x128xf32>
    %50 = vector.shape_cast %49 : vector<1x1x2x128xf32> to vector<2x128xf32>
    %51 = vector.shape_cast %48 : vector<2x128xf32> to vector<1x1x2x128xf32>
    tpu.vector_store %arg5[%c0_21, %c0_22, %c0_23, %c0_24], %51 {strides = array<i32>} : memref<1x4x2x128xf32, #tpu.memory_space<vmem>>, vector<1x1x2x128xf32>,
    %52 = vector.broadcast %1 : f32 to vector<2x128xf32>
    %53 = arith.mulf %21, %52 : vector<2x128xf32>
    %54 = vector.broadcast %17 : f32 to vector<2x128xf32>
    %55 = arith.addf %53, %54 : vector<2x128xf32>
    %56 = vector.broadcast %5 : f32 to vector<2x128xf32>
    %57 = arith.mulf %23, %56 : vector<2x128xf32>
    %58 = arith.addf %55, %57 : vector<2x128xf32>
    %59 = vector.broadcast %9 : f32 to vector<2x128xf32>
    %60 = arith.mulf %25, %59 : vector<2x128xf32>
    %61 = arith.addf %58, %60 : vector<2x128xf32>
    %62 = vector.broadcast %13 : f32 to vector<2x128xf32>
    %63 = arith.mulf %27, %62 : vector<2x128xf32>
    %64 = arith.addf %61, %63 : vector<2x128xf32>
    %cst_25 = arith.constant 0.000000e+00 : f32
    %65 = vector.broadcast %cst_25 : f32 to vector<2x128xf32>
    %66 = arith.maximumf %64, %65 : vector<2x128xf32>
    %67 = math.absf %64 : vector<2x128xf32>
    %cst_26 = arith.constant 0.000000e+00 : f32
    %68 = vector.broadcast %cst_26 : f32 to vector<2x128xf32>
    %69 = arith.subf %68, %67 : vector<2x128xf32>
    %70 = math.exp %69 : vector<2x128xf32>
    %71 = math.log1p %70 : vector<2x128xf32>
    %72 = arith.addf %66, %71 : vector<2x128xf32>
    %c0_27 = arith.constant 0 : index
    %c1_28 = arith.constant 1 : index
    %c0_29 = arith.constant 0 : index
    %c0_30 = arith.constant 0 : index
    %73 = vector.load %arg5[%c0_27, %c1_28, %c0_29, %c0_30] : memref<1x4x2x128xf32, #tpu.memory_space<vmem>>, vector<1x1x2x128xf32>
    %74 = vector.shape_cast %73 : vector<1x1x2x128xf32> to vector<2x128xf32>
    %75 = vector.shape_cast %72 : vector<2x128xf32> to vector<1x1x2x128xf32>
    tpu.vector_store %arg5[%c0_27, %c1_28, %c0_29, %c0_30], %75 {strides = array<i32>} : memref<1x4x2x128xf32, #tpu.memory_space<vmem>>, vector<1x1x2x128xf32>,
    %76 = vector.broadcast %2 : f32 to vector<2x128xf32>
    %77 = arith.mulf %21, %76 : vector<2x128xf32>
    %78 = vector.broadcast %18 : f32 to vector<2x128xf32>
    %79 = arith.addf %77, %78 : vector<2x128xf32>
    %80 = vector.broadcast %6 : f32 to vector<2x128xf32>
    %81 = arith.mulf %23, %80 : vector<2x128xf32>
    %82 = arith.addf %79, %81 : vector<2x128xf32>
    %83 = vector.broadcast %10 : f32 to vector<2x128xf32>
    %84 = arith.mulf %25, %83 : vector<2x128xf32>
    %85 = arith.addf %82, %84 : vector<2x128xf32>
    %86 = vector.broadcast %14 : f32 to vector<2x128xf32>
    %87 = arith.mulf %27, %86 : vector<2x128xf32>
    %88 = arith.addf %85, %87 : vector<2x128xf32>
    %cst_31 = arith.constant 0.000000e+00 : f32
    %89 = vector.broadcast %cst_31 : f32 to vector<2x128xf32>
    %90 = arith.maximumf %88, %89 : vector<2x128xf32>
    %91 = math.absf %88 : vector<2x128xf32>
    %cst_32 = arith.constant 0.000000e+00 : f32
    %92 = vector.broadcast %cst_32 : f32 to vector<2x128xf32>
    %93 = arith.subf %92, %91 : vector<2x128xf32>
    %94 = math.exp %93 : vector<2x128xf32>
    %95 = math.log1p %94 : vector<2x128xf32>
    %96 = arith.addf %90, %95 : vector<2x128xf32>
    %c0_33 = arith.constant 0 : index
    %c2_34 = arith.constant 2 : index
    %c0_35 = arith.constant 0 : index
    %c0_36 = arith.constant 0 : index
    %97 = vector.load %arg5[%c0_33, %c2_34, %c0_35, %c0_36] : memref<1x4x2x128xf32, #tpu.memory_space<vmem>>, vector<1x1x2x128xf32>
    %98 = vector.shape_cast %97 : vector<1x1x2x128xf32> to vector<2x128xf32>
    %99 = vector.shape_cast %96 : vector<2x128xf32> to vector<1x1x2x128xf32>
    tpu.vector_store %arg5[%c0_33, %c2_34, %c0_35, %c0_36], %99 {strides = array<i32>} : memref<1x4x2x128xf32, #tpu.memory_space<vmem>>, vector<1x1x2x128xf32>,
    %100 = vector.broadcast %3 : f32 to vector<2x128xf32>
    %101 = arith.mulf %21, %100 : vector<2x128xf32>
    %102 = vector.broadcast %19 : f32 to vector<2x128xf32>
    %103 = arith.addf %101, %102 : vector<2x128xf32>
    %104 = vector.broadcast %7 : f32 to vector<2x128xf32>
    %105 = arith.mulf %23, %104 : vector<2x128xf32>
    %106 = arith.addf %103, %105 : vector<2x128xf32>
    %107 = vector.broadcast %11 : f32 to vector<2x128xf32>
    %108 = arith.mulf %25, %107 : vector<2x128xf32>
    %109 = arith.addf %106, %108 : vector<2x128xf32>
    %110 = vector.broadcast %15 : f32 to vector<2x128xf32>
    %111 = arith.mulf %27, %110 : vector<2x128xf32>
    %112 = arith.addf %109, %111 : vector<2x128xf32>
    %cst_37 = arith.constant 0.000000e+00 : f32
    %113 = vector.broadcast %cst_37 : f32 to vector<2x128xf32>
    %114 = arith.maximumf %112, %113 : vector<2x128xf32>
    %115 = math.absf %112 : vector<2x128xf32>
    %cst_38 = arith.constant 0.000000e+00 : f32
    %116 = vector.broadcast %cst_38 : f32 to vector<2x128xf32>
    %117 = arith.subf %116, %115 : vector<2x128xf32>
    %118 = math.exp %117 : vector<2x128xf32>
    %119 = math.log1p %118 : vector<2x128xf32>
    %120 = arith.addf %114, %119 : vector<2x128xf32>
    %c0_39 = arith.constant 0 : index
    %c3_40 = arith.constant 3 : index
    %c0_41 = arith.constant 0 : index
    %c0_42 = arith.constant 0 : index
    %121 = vector.load %arg5[%c0_39, %c3_40, %c0_41, %c0_42] : memref<1x4x2x128xf32, #tpu.memory_space<vmem>>, vector<1x1x2x128xf32>
    %122 = vector.shape_cast %121 : vector<1x1x2x128xf32> to vector<2x128xf32>
    %123 = vector.shape_cast %120 : vector<2x128xf32> to vector<1x1x2x128xf32>
    tpu.vector_store %arg5[%c0_39, %c3_40, %c0_41, %c0_42], %123 {strides = array<i32>} : memref<1x4x2x128xf32, #tpu.memory_space<vmem>>, vector<1x1x2x128xf32>,
    return
  }
  func.func @transform_0(%arg0: i32, %arg1: i32) -> (i32, i32, i32, i32) {
    %c0_i32 = arith.constant 0 : i32
    %c0_i32_0 = arith.constant 0 : i32
    %c0_i32_1 = arith.constant 0 : i32
    return %arg0, %c0_i32, %arg1, %c0_i32_0 : i32, i32, i32, i32
  }
  func.func @transform_1(%arg0: i32, %arg1: i32) -> i32 {
    %c0_i32 = arith.constant 0 : i32
    %c0_i32_0 = arith.constant 0 : i32
    return %c0_i32 : i32
  }
  func.func @transform_2(%arg0: i32, %arg1: i32) -> i32 {
    %c0_i32 = arith.constant 0 : i32
    %c0_i32_0 = arith.constant 0 : i32
    return %c0_i32 : i32
  }
  func.func @transform_3(%arg0: i32, %arg1: i32) -> (i32, i32, i32, i32) {
    %c0_i32 = arith.constant 0 : i32
    %c0_i32_0 = arith.constant 0 : i32
    %c0_i32_1 = arith.constant 0 : i32
    return %arg0, %c0_i32, %arg1, %c0_i32_0 : i32, i32, i32, i32
  }
}

</mosaic_0001>

<llo_original>
// kernel: tpu_custom_call.1
$region0: #{tpu_custom_call.1}
  #allocation0 [shape = 'u32[]', space=smem, size = 0x4, offset = 0x4, fixed_abs, tag = 'smem constant byte address 0x4 - core index']
  #allocation1 [shape = 'u32[144,128]{1,0:T(1,128)}', space=vmem, size = 0x12000, scoped, tag = 'internal scratch']
  %s0 = inlined_call_operand.hbm [shape: f32[2,4,2,128], index: 0, kind: input, shape index: {}]
  %s1 = inlined_call_operand.vmem [shape: f32[16], index: 1, kind: input, shape index: {}]
  %s2 = inlined_call_operand.vmem [shape: f32[4], index: 2, kind: input, shape index: {}]
  %s3 = inlined_call_operand.hbm [shape: f32[2,4,2,128], index: 3, kind: output, shape index: {}]
  %s4 = sld [smem:[#allocation0]]
  $region57: #{tpu_custom_call.1} parent=0
    _
  %s6 = ssub.s32 1, %s4
  %s7 = scalar_select 0, %s6, %s4
  $region1: #{tpu_custom_call.1} parent=0
    #allocation2 [shape = 'u8[8192]{0}', space=vmem, size = 0x2000, scoped, tag = 'input window, operand 0']
    #allocation3 [shape = 's32[2]{0}', space=sflag, size = 0x8, scoped, tag = 'scoped memory for tpu_custom_call.1']
    #allocation4 [shape = 's32[2]{0}', space=sflag, size = 0x8, scoped, tag = 'scoped memory for tpu_custom_call.1']
    #allocation5 [shape = 's32[2]{0}', space=sflag, size = 0x8, scoped, tag = 'scoped memory for tpu_custom_call.1']
    #allocation6 [shape = 'u8[512]{0}', space=smem, size = 0x200, scoped, tag = 'input window, operand 1, single buffered']
    #allocation7 [shape = 'u8[512]{0}', space=smem, size = 0x200, scoped, tag = 'input window, operand 2, single buffered']
    #allocation8 [shape = 's32[1]{0}', space=sflag, size = 0x4, scoped, tag = 'scoped memory for tpu_custom_call.1']
    #allocation9 [shape = 'u8[8192]{0}', space=vmem, size = 0x2000, scoped, tag = 'output window, operand 0']
    %8 = vsyncpa [#allocation3], 0
    %s9 = scalar_lea.sflag [#allocation3], 1
    %10 = vsyncpa %s9, 0
    %11 = vsyncpa [#allocation5], 0
    %12 = vsyncpa [#allocation8], 0
    %13 = vsyncpa [#allocation4], 0
    %s14 = scalar_lea.sflag [#allocation4], 1
    %15 = vsyncpa %s14, 0
    loop: start=0, step=1, limit=4
    $region2: #{tpu_custom_call.1} parent=1 // loop_pre_header
      _
    $region3: #{tpu_custom_call.1} parent=1 // loop_header
      %s17 = sphi 0, %s21
      %p18 = scmp.ge.s32.totalorder %s17, 4
      %s24 = sphi 0, %s36
      %s25 = sphi 0, %s32
      %s26 = sphi 0, %s24
      %s27 = sphi 0, %s25
      %s28 = sphi 0, %s26
      %s29 = sphi 0, %s27
      %s41 = sphi 0, %s43
      %s44 = sphi 0, %s41
      %s45 = sphi 0, %s44
      %s61 = sphi 0, %s45
      %s65 = sphi 0, %s65
      %s67 = sphi 0, %s65
      %s68 = sphi 0, %s67
      %s82 = sphi 0, %s68
      %s86 = sphi 0, %s86
      %s88 = sphi 0, %s86
      %s89 = sphi 0, %s88
      %s103 = sphi 0, %s89
      %s111 = sphi 0, %s113
      %s114 = sphi 0, %s111
      %s115 = sphi 0, %s114
      %s131 = sphi 0, %s115
    $region4: #{tpu_custom_call.1} parent=1 // loop_header_branch
      %20 = sbr.rel (%p18) target = $region8
    $region5: #{tpu_custom_call.1} parent=1 // loop_body
      %s22 = ssub.s32 %s17, 1
      %s23 = ssub.s32 %s17, 2
      %s30 = sadd.s32 1, %s25
      %p31 = scmp.ge.s32.totalorder %s30, 1
      %s32 = scalar_select %p31, 0, %s30
      %s33 = sadd.s32 1, %s24
      %s34 = scalar_select %p31, %s33, %s24
      %p35 = scmp.ge.s32.totalorder %s34, 2
      %s36 = scalar_select %p35, 0, %s34
      %s37 = ssub.s32 %s24, %s36
      %s38 = ssub.s32 %s25, %s32
      %s39 = sor.u32 %s37, %s38
      %p40 = scmp.eq.s32.totalorder %s39, 0
      %s42 = sadd.s32 %s41, 1
      %s43 = scalar_select %p40, %s41, %s42
      %p46 = pneg %p40
      %p47 = scmp.eq.s32.totalorder %s17, 1
      %p48 = por %p46, %p47
      %p49 = scmp.ne.s32.totalorder %s41, %s44
      %p50 = scmp.eq.s32.totalorder %s17, 0
      %p51 = por %p49, %p50
      %p52 = scmp.ne.s32.totalorder %s41, %s44
      %p53 = scmp.eq.s32.totalorder %s22, 1
      %p54 = por %p52, %p53
      %p55 = scmp.ne.s32.totalorder %s44, %s45
      %p56 = scmp.eq.s32.totalorder %s22, 0
      %p57 = por %p55, %p56
      %p58 = scmp.ne.s32.totalorder %s44, %s45
      %p59 = scmp.eq.s32.totalorder %s23, 1
      %p60 = por %p58, %p59
      %p62 = scmp.ne.s32.totalorder %s45, %s61
      %p63 = scmp.eq.s32.totalorder %s23, 0
      %p64 = por %p62, %p63
      %s66 = sadd.s32 %s65, 1
      %p69 = scmp.eq.s32.totalorder %s17, 1
      %p70 = scmp.ne.s32.totalorder %s65, %s67
      %p71 = scmp.eq.s32.totalorder %s17, 0
      %p72 = por %p70, %p71
      %p73 = scmp.ne.s32.totalorder %s65, %s67
      %p74 = scmp.eq.s32.totalorder %s22, 1
      %p75 = por %p73, %p74
      %p76 = scmp.ne.s32.totalorder %s67, %s68
      %p77 = scmp.eq.s32.totalorder %s22, 0
      %p78 = por %p76, %p77
      %p79 = scmp.ne.s32.totalorder %s67, %s68
      %p80 = scmp.eq.s32.totalorder %s23, 1
      %p81 = por %p79, %p80
      %p83 = scmp.ne.s32.totalorder %s68, %s82
      %p84 = scmp.eq.s32.totalorder %s23, 0
      %p85 = por %p83, %p84
      %s87 = sadd.s32 %s86, 1
      %p90 = scmp.eq.s32.totalorder %s17, 1
      %p91 = scmp.ne.s32.totalorder %s86, %s88
      %p92 = scmp.eq.s32.totalorder %s17, 0
      %p93 = por %p91, %p92
      %p94 = scmp.ne.s32.totalorder %s86, %s88
      %p95 = scmp.eq.s32.totalorder %s22, 1
      %p96 = por %p94, %p95
      %p97 = scmp.ne.s32.totalorder %s88, %s89
      %p98 = scmp.eq.s32.totalorder %s22, 0
      %p99 = por %p97, %p98
      %p100 = scmp.ne.s32.totalorder %s88, %s89
      %p101 = scmp.eq.s32.totalorder %s23, 1
      %p102 = por %p100, %p101
      %p104 = scmp.ne.s32.totalorder %s89, %s103
      %p105 = scmp.eq.s32.totalorder %s23, 0
      %p106 = por %p104, %p105
      %s107 = ssub.s32 %s24, %s36
      %s108 = ssub.s32 %s25, %s32
      %s109 = sor.u32 %s107, %s108
      %p110 = scmp.eq.s32.totalorder %s109, 0
      %s112 = sadd.s32 %s111, 1
      %s113 = scalar_select %p110, %s111, %s112
      %p116 = pneg %p110
      %p117 = scmp.eq.s32.totalorder %s17, 1
      %p118 = por %p116, %p117
      %p119 = scmp.ne.s32.totalorder %s111, %s114
      %p120 = scmp.eq.s32.totalorder %s17, 0
      %p121 = por %p119, %p120
      %p122 = scmp.ne.s32.totalorder %s111, %s114
      %p123 = scmp.eq.s32.totalorder %s22, 1
      %p124 = por %p122, %p123
      %p125 = scmp.ne.s32.totalorder %s114, %s115
      %p126 = scmp.eq.s32.totalorder %s22, 0
      %p127 = por %p125, %p126
      %p128 = scmp.ne.s32.totalorder %s114, %s115
      %p129 = scmp.eq.s32.totalorder %s23, 1
      %p130 = por %p128, %p129
      %p132 = scmp.ne.s32.totalorder %s115, %s131
      %p133 = scmp.eq.s32.totalorder %s23, 0
      %p134 = por %p132, %p133
      %p135 = scmp.le.s32.totalorder 1, %s17
      %p136 = scmp.lt.s32.totalorder %s17, 3
      %p137 = pnand %p135, %p136
      %p138 = pneg %p137
      // Predicated region
      $region9: #{tpu_custom_call.1} parent=5 // pred_check
        _
      $region10: #{tpu_custom_call.1} parent=5 // pred_check_branch
        %140 = sbr.rel (%p137) target = $region12
      $region11: #{tpu_custom_call.1} parent=5 // pred_region
        %s141 = ssub.s32 %s17, 1
        // Predicated region
        $region13: #{tpu_custom_call.1} parent=11 // pred_check
          %p142 = pneg %p78
        $region14: #{tpu_custom_call.1} parent=11 // pred_check_branch
          %144 = sbr.rel (%p142) target = $region16
        $region15: #{tpu_custom_call.1} parent=11 // pred_region
          %s146 = ssub.s32 16, 16
          %147 = vsyncadd [#allocation5], %s146
          %s149 = sshll.u32 %s1, 4
          %s150 = int_to_ptr.vmem [resolvable:$true] %s149
          %152 = dma.vmem_to_smem %s150, 16, [#allocation6], [#allocation5]
        $region16: #{tpu_custom_call.1} parent=11 // pred_fallthru
          _
        // Predicated region
        $region17: #{tpu_custom_call.1} parent=11 // pred_check
          %p153 = pneg %p99
        $region18: #{tpu_custom_call.1} parent=11 // pred_check_branch
          %155 = sbr.rel (%p153) target = $region20
        $region19: #{tpu_custom_call.1} parent=11 // pred_region
          %s157 = ssub.s32 16, 16
          %158 = vsyncadd [#allocation8], %s157
          %s160 = sshll.u32 %s2, 4
          %s161 = int_to_ptr.vmem [resolvable:$true] %s160
          %163 = dma.vmem_to_smem %s161, 16, [#allocation7], [#allocation8]
        $region20: #{tpu_custom_call.1} parent=11 // pred_fallthru
          _
      $region12: #{tpu_custom_call.1} parent=5 // pred_fallthru
        _
      %p164 = scmp.lt.s32.totalorder %s17, 2
      // Predicated region
      $region21: #{tpu_custom_call.1} parent=5 // pred_check
        %p165 = pneg %p164
      $region22: #{tpu_custom_call.1} parent=5 // pred_check_branch
        %167 = sbr.rel (%p165) target = $region24
      $region23: #{tpu_custom_call.1} parent=5 // pred_region
        // Predicated region
        $region25: #{tpu_custom_call.1} parent=23 // pred_check
          %p168 = pneg %p51
        $region26: #{tpu_custom_call.1} parent=23 // pred_check_branch
          %170 = sbr.rel (%p168) target = $region28
        $region27: #{tpu_custom_call.1} parent=23 // pred_region
          %s171 = sand.u32 %s41, 1
          %s172 = scalar_lea.sflag [#allocation3], %s171
          %s173 = sand.u32 %s41, 1
          %s174 = smul.addr %s173, 8
          %s175 = scalar_lea.vmem [#allocation2], %s174
          %s177 = ssub.s32 128, 128
          %178 = vsyncadd %s172, %s177
          %s179 = smul.addr %s24, 4
          %s180 = sadd.s32 %s25, %s179
          %s181 = smul.addr %s180, 32
          %s182 = scalar_lea.hbm %s0, %s181
          %s183 = sshll.u32 %s175, 4
          %s184 = int_to_ptr.vmem [resolvable:$true] %s183
          %189 = dma.hbm_to_vmem [thread:$0]  %s182, 128, %s184, %s172, 32, 32, 2
        $region28: #{tpu_custom_call.1} parent=23 // pred_fallthru
          _
      $region24: #{tpu_custom_call.1} parent=5 // pred_fallthru
        _
      %p190 = scmp.le.s32.totalorder 1, %s17
      %p191 = scmp.lt.s32.totalorder %s17, 3
      %p192 = pnand %p190, %p191
      %p193 = pneg %p192
      // Predicated region
      $region29: #{tpu_custom_call.1} parent=5 // pred_check
        _
      $region30: #{tpu_custom_call.1} parent=5 // pred_check_branch
        %195 = sbr.rel (%p192) target = $region32
      $region31: #{tpu_custom_call.1} parent=5 // pred_region
        %s196 = ssub.s32 %s17, 1
        %s197 = sand.u32 %s44, 1
        %s198 = scalar_lea.sflag [#allocation3], %s197
        %s199 = sand.u32 %s44, 1
        %s200 = smul.addr %s199, 8
        %s201 = scalar_lea.vmem [#allocation2], %s200
        // Predicated region
        $region33: #{tpu_custom_call.1} parent=31 // pred_check
          %p202 = pneg %p57
        $region34: #{tpu_custom_call.1} parent=31 // pred_check_branch
          %204 = sbr.rel (%p202) target = $region36
        $region35: #{tpu_custom_call.1} parent=31 // pred_region
          %205 = dma.done %s198, 128
        $region36: #{tpu_custom_call.1} parent=31 // pred_fallthru
          _
        // Predicated region
        $region37: #{tpu_custom_call.1} parent=31 // pred_check
          %p206 = pneg %p78
        $region38: #{tpu_custom_call.1} parent=31 // pred_check_branch
          %208 = sbr.rel (%p206) target = $region40
        $region39: #{tpu_custom_call.1} parent=31 // pred_region
          %209 = dma.done [#allocation5], 16
        $region40: #{tpu_custom_call.1} parent=31 // pred_fallthru
          _
        // Predicated region
        $region41: #{tpu_custom_call.1} parent=31 // pred_check
          %p210 = pneg %p99
        $region42: #{tpu_custom_call.1} parent=31 // pred_check_branch
          %212 = sbr.rel (%p210) target = $region44
        $region43: #{tpu_custom_call.1} parent=31 // pred_region
          %213 = dma.done [#allocation8], 16
        $region44: #{tpu_custom_call.1} parent=31 // pred_fallthru
          _
        %214 = sfence
        %s215 = sand.u32 %s44, 1
        %s216 = scalar_lea.sflag [#allocation3], %s215
        %s217 = sand.u32 %s44, 1
        %s218 = smul.addr %s217, 8
        %s219 = scalar_lea.vmem [#allocation2], %s218
        %p220 = pneg %p57
        %p221 = pneg %p54
        %p222 = pneg %p78
        %p223 = pneg %p75
        %p224 = pneg %p99
        %p225 = pneg %p96
        %p226 = pneg %p127
        %p227 = pneg %p124
        %s228 = sand.u32 %s114, 1
        %s229 = scalar_lea.sflag [#allocation4], %s228
        %s230 = sand.u32 %s114, 1
        %s231 = smul.addr %s230, 8
        %s232 = scalar_lea.vmem [#allocation9], %s231
        %s233 = sld [smem:[#allocation6]]
        %s234 = sld [smem:[#allocation6 + $0x1]]
        %s235 = sld [smem:[#allocation6 + $0x2]]
        %s236 = sld [smem:[#allocation6 + $0x3]]
        %s237 = sld [smem:[#allocation6 + $0x4]]
        %s238 = sld [smem:[#allocation6 + $0x5]]
        %s239 = sld [smem:[#allocation6 + $0x6]]
        %s240 = sld [smem:[#allocation6 + $0x7]]
        %s241 = sld [smem:[#allocation6 + $0x8]]
        %s242 = sld [smem:[#allocation6 + $0x9]]
        %s243 = sld [smem:[#allocation6 + $0xa]]
        %s244 = sld [smem:[#allocation6 + $0xb]]
        %s245 = sld [smem:[#allocation6 + $0xc]]
        %s246 = sld [smem:[#allocation6 + $0xd]]
        %s247 = sld [smem:[#allocation6 + $0xe]]
        %s248 = sld [smem:[#allocation6 + $0xf]]
        %s249 = sld [smem:[#allocation7]]
        %s250 = sld [smem:[#allocation7 + $0x1]]
        %s251 = sld [smem:[#allocation7 + $0x2]]
        %s252 = sld [smem:[#allocation7 + $0x3]]
        %v253 = vld [vmem:[%s201] sm:$0x3]
        %s254 = scalar_lea.vmem %s201, 2 [#allocation2]
        %v255 = vld [vmem:[%s254] sm:$0x3]
        %s256 = scalar_lea.vmem %s201, 4 [#allocation2]
        %v257 = vld [vmem:[%s256] sm:$0x3]
        %s258 = scalar_lea.vmem %s201, 6 [#allocation2]
        %v259 = vld [vmem:[%s258] sm:$0x3]
        %v260 = vstv %s233
        %v261 = vmul.f32 %v253, %v260
        %v262 = vstv %s249
        %v263 = vadd.f32 %v261, %v262
        %v264 = vstv %s237
        %v265 = vmul.f32 %v255, %v264
        %v266 = vadd.f32 %v263, %v265
        %v267 = vstv %s241
        %v268 = vmul.f32 %v257, %v267
        %v269 = vadd.f32 %v266, %v268
        %v270 = vstv %s245
        %v271 = vmul.f32 %v259, %v270
        %v272 = vadd.f32 %v269, %v271
        %v273 = vmax.f32 %v272, 0.0
        %v274 = vand.u32 2147483647, %v272
        %v275 = vsub.f32 0.0, %v274
        %v276 = vmul.f32 %v275, 1.442695
        %v277 = vpow.pop %v276
        %v278 = vadd.f32 %v277, 1.0
        %v279 = vlog2.pop %v278
        %v280 = vmul.f32 %v279, 0.6931472
        %v281 = vmul.f32 -0.5, %v277
        %v282 = vadd.f32 %v281, 1.0
        %v283 = vmul.f32 %v282, %v277
        %v284 = vand.u32 2147483647, %v277
        %vm285 = vcmp.lt.f32.partialorder %v284, 0.0004427343
        %v286 = vsel %vm285, %v283, %v280
        %v287 = vadd.f32 %v273, %v286
        %288 = vst [vmem:[%s232] sm:$0x3] %v287
        %v289 = vstv %s234
        %v290 = vmul.f32 %v253, %v289
        %v291 = vstv %s250
        %v292 = vadd.f32 %v290, %v291
        %v293 = vstv %s238
        %v294 = vmul.f32 %v255, %v293
        %v295 = vadd.f32 %v292, %v294
        %v296 = vstv %s242
        %v297 = vmul.f32 %v257, %v296
        %v298 = vadd.f32 %v295, %v297
        %v299 = vstv %s246
        %v300 = vmul.f32 %v259, %v299
        %v301 = vadd.f32 %v298, %v300
        %v302 = vmax.f32 %v301, 0.0
        %v303 = vand.u32 2147483647, %v301
        %v304 = vsub.f32 0.0, %v303
        %v305 = vmul.f32 %v304, 1.442695
        %v306 = vpow.pop %v305
        %v307 = vadd.f32 %v306, 1.0
        %v308 = vlog2.pop %v307
        %v309 = vmul.f32 %v308, 0.6931472
        %v310 = vmul.f32 -0.5, %v306
        %v311 = vadd.f32 %v310, 1.0
        %v312 = vmul.f32 %v311, %v306
        %v313 = vand.u32 2147483647, %v306
        %vm314 = vcmp.lt.f32.partialorder %v313, 0.0004427343
        %v315 = vsel %vm314, %v312, %v309
        %v316 = vadd.f32 %v302, %v315
        %s317 = scalar_lea.vmem %s232, 2 [#allocation9]
        %318 = vst [vmem:[%s317] sm:$0x3] %v316
        %v319 = vstv %s235
        %v320 = vmul.f32 %v253, %v319
        %v321 = vstv %s251
        %v322 = vadd.f32 %v320, %v321
        %v323 = vstv %s239
        %v324 = vmul.f32 %v255, %v323
        %v325 = vadd.f32 %v322, %v324
        %v326 = vstv %s243
        %v327 = vmul.f32 %v257, %v326
        %v328 = vadd.f32 %v325, %v327
        %v329 = vstv %s247
        %v330 = vmul.f32 %v259, %v329
        %v331 = vadd.f32 %v328, %v330
        %v332 = vmax.f32 %v331, 0.0
        %v333 = vand.u32 2147483647, %v331
        %v334 = vsub.f32 0.0, %v333
        %v335 = vmul.f32 %v334, 1.442695
        %v336 = vpow.pop %v335
        %v337 = vadd.f32 %v336, 1.0
        %v338 = vlog2.pop %v337
        %v339 = vmul.f32 %v338, 0.6931472
        %v340 = vmul.f32 -0.5, %v336
        %v341 = vadd.f32 %v340, 1.0
        %v342 = vmul.f32 %v341, %v336
        %v343 = vand.u32 2147483647, %v336
        %vm344 = vcmp.lt.f32.partialorder %v343, 0.0004427343
        %v345 = vsel %vm344, %v342, %v339
        %v346 = vadd.f32 %v332, %v345
        %s347 = scalar_lea.vmem %s232, 4 [#allocation9]
        %348 = vst [vmem:[%s347] sm:$0x3] %v346
        %v349 = vstv %s236
        %v350 = vmul.f32 %v253, %v349
        %v351 = vstv %s252
        %v352 = vadd.f32 %v350, %v351
        %v353 = vstv %s240
        %v354 = vmul.f32 %v255, %v353
        %v355 = vadd.f32 %v352, %v354
        %v356 = vstv %s244
        %v357 = vmul.f32 %v257, %v356
        %v358 = vadd.f32 %v355, %v357
        %v359 = vstv %s248
        %v360 = vmul.f32 %v259, %v359
        %v361 = vadd.f32 %v358, %v360
        %v362 = vmax.f32 %v361, 0.0
        %v363 = vand.u32 2147483647, %v361
        %v364 = vsub.f32 0.0, %v363
        %v365 = vmul.f32 %v364, 1.442695
        %v366 = vpow.pop %v365
        %v367 = vadd.f32 %v366, 1.0
        %v368 = vlog2.pop %v367
        %v369 = vmul.f32 %v368, 0.6931472
        %v370 = vmul.f32 -0.5, %v366
        %v371 = vadd.f32 %v370, 1.0
        %v372 = vmul.f32 %v371, %v366
        %v373 = vand.u32 2147483647, %v366
        %vm374 = vcmp.lt.f32.partialorder %v373, 0.0004427343
        %v375 = vsel %vm374, %v372, %v369
        %v376 = vadd.f32 %v362, %v375
        %s377 = scalar_lea.vmem %s232, 6 [#allocation9]
        %378 = vst [vmem:[%s377] sm:$0x3] %v376
        %s379 = sand.u32 %s114, 1
        %s380 = scalar_lea.sflag [#allocation4], %s379
        %s381 = sand.u32 %s114, 1
        %s382 = smul.addr %s381, 8
        %s383 = scalar_lea.vmem [#allocation9], %s382
        // Predicated region
        $region45: #{tpu_custom_call.1} parent=31 // pred_check
          %p384 = pneg %p124
        $region46: #{tpu_custom_call.1} parent=31 // pred_check_branch
          %386 = sbr.rel (%p384) target = $region48
        $region47: #{tpu_custom_call.1} parent=31 // pred_region
          %s388 = ssub.s32 128, 128
          %389 = vsyncadd %s380, %s388
          %s390 = smul.addr %s26, 4
          %s391 = sadd.s32 %s27, %s390
          %s392 = smul.addr %s391, 32
          %s393 = scalar_lea.hbm %s3, %s392
          %s394 = sshll.u32 %s383, 4
          %s395 = int_to_ptr.vmem [resolvable:$true] %s394
          %400 = dma.vmem_to_hbm [thread:$0]  %s395, 128, %s393, %s380, 32, 32, 2
        $region48: #{tpu_custom_call.1} parent=31 // pred_fallthru
          _
      $region32: #{tpu_custom_call.1} parent=5 // pred_fallthru
        _
      %p401 = scmp.le.s32.totalorder 2, %s17
      // Predicated region
      $region49: #{tpu_custom_call.1} parent=5 // pred_check
        %p402 = pneg %p401
      $region50: #{tpu_custom_call.1} parent=5 // pred_check_branch
        %404 = sbr.rel (%p402) target = $region52
      $region51: #{tpu_custom_call.1} parent=5 // pred_region
        %s405 = ssub.s32 %s17, 2
        // Predicated region
        $region53: #{tpu_custom_call.1} parent=51 // pred_check
          %p406 = pneg %p130
        $region54: #{tpu_custom_call.1} parent=51 // pred_check_branch
          %408 = sbr.rel (%p406) target = $region56
        $region55: #{tpu_custom_call.1} parent=51 // pred_region
          %s409 = sand.u32 %s115, 1
          %s410 = scalar_lea.sflag [#allocation4], %s409
          %s411 = sand.u32 %s115, 1
          %s412 = smul.addr %s411, 8
          %s413 = scalar_lea.vmem [#allocation9], %s412
          %414 = dma.done %s410, 128
        $region56: #{tpu_custom_call.1} parent=51 // pred_fallthru
          _
      $region52: #{tpu_custom_call.1} parent=5 // pred_fallthru
        _
    $region6: #{tpu_custom_call.1} parent=1 // loop_footer
      %s21 = sadd.s32 1, %s17
    $region7: #{tpu_custom_call.1} parent=1 // loop_footer_branch
      %16 = sbr.rel target = $region3
    $region8: #{tpu_custom_call.1} parent=1 // loop_exit
      _
    %415 = vsyncpa [#allocation3], 1
    %s416 = scalar_lea.sflag [#allocation3], 1
    %417 = vsyncpa %s416, 1
    %418 = vsyncpa [#allocation4], 1
    %s419 = scalar_lea.sflag [#allocation4], 1
    %420 = vsyncpa %s419, 1
    %421 = vsyncpa [#allocation5], 1
    %s422 = scalar_lea.sflag [#allocation5], 1
    %423 = vsyncpa %s422, 1
    %424 = vsyncpa [#allocation8], 1

</llo_original>
